<compile_context>
chip_gen: v6e
topology: v6e:2x2x1
jax: 0.10.0
libtpu: 0.0.40
codegen_flags: <defaults>
</compile_context>

<pallas_src>
import functools

import jax
import jax.numpy as jnp
from jax.experimental import pallas as pl
from jax.experimental.pallas import tpu as pltpu


def _round_up(x, m):
    return ((x + m - 1) // m) * m


def vae_kernel(x_ref, eps_ref,
               w1_ref, b1_ref,
               wml_ref, bml_ref,
               wd1_ref, bd1_ref,
               wd2_ref, bd2_ref,
               recon_ref, mulv_ref):
    # ---- encoder ----
    x = x_ref[...]                                                        # [TB, D] bf16
    h = jnp.dot(x, w1_ref[...], preferred_element_type=jnp.float32)
    h = jnp.maximum(h + b1_ref[...], 0.0)                                 # f32 ReLU

    # fused mu / logvar projection: one [hidden, 2*latent] matmul
    mulv = jnp.dot(h.astype(jnp.bfloat16), wml_ref[...],
                   preferred_element_type=jnp.float32) + bml_ref[...]     # [TB, 2L]
    L = mulv.shape[-1] // 2
    mu = mulv[:, :L]
    lv = mulv[:, L:]

    # ---- reparameterize: z = mu + eps * exp(0.5 * logvar) ----
    z = mu + eps_ref[...] * jnp.exp(0.5 * lv)                             # [TB, L] f32

    # ---- decoder ----
    hd = jnp.dot(z.astype(jnp.bfloat16), wd1_ref[...],
                 preferred_element_type=jnp.float32)
    hd = jnp.maximum(hd + bd1_ref[...], 0.0)
    logits = jnp.dot(hd.astype(jnp.bfloat16), wd2_ref[...],
                     preferred_element_type=jnp.float32) + bd2_ref[...]

    recon_ref[...] = jax.nn.sigmoid(logits)                               # [TB, D] f32
    mulv_ref[...] = mulv                                                  # packed mu|lv


def pack_params(params):
    """Cast weights to bf16 (MXU operands) and fuse mu/logvar projections."""
    wml = jnp.concatenate([params["wmu"], params["wlv"]], axis=1)
    bml = jnp.concatenate([params["bmu"], params["blv"]], axis=1)
    return dict(
        w1=params["w1"].astype(jnp.bfloat16),  b1=params["b1"].astype(jnp.float32),
        wml=wml.astype(jnp.bfloat16),          bml=bml.astype(jnp.float32),
        wd1=params["wd1"].astype(jnp.bfloat16), bd1=params["bd1"].astype(jnp.float32),
        wd2=params["wd2"].astype(jnp.bfloat16), bd2=params["bd2"].astype(jnp.float32),
    )


@functools.partial(jax.jit, static_argnames=())
def _vae_forward_packed(x_flat_bf16, eps, pk, B, C, H, W):
    # (non-jitted path below; kept simple)
    raise NotImplementedError


def vae_forward(x_nchw, eps, params):
    """Run the fused VAE forward Pallas kernel.

    x_nchw : [B, C, H, W] float32
    eps    : [B, latent_dim] float32 (standard-normal noise for reparameterization)
    params : dict of f32 weight/bias arrays (see init_params)
    Returns (recon_nchw, mu, logvar).
    """
    B, C, H, W = x_nchw.shape
    D = C * H * W
    pk = pack_params(params)
    hidden = pk["w1"].shape[1]
    latent = pk["wd1"].shape[0]

    # Batch tile: at least 8 rows (sublane multiple), up to 128 rows per grid step.
    TB = min(128, _round_up(B, 8))
    Bp = _round_up(B, TB)

    x_flat = x_nchw.reshape(B, D).astype(jnp.bfloat16)
    if Bp != B:
        x_flat = jnp.pad(x_flat, ((0, Bp - B), (0, 0)))
        eps_p = jnp.pad(eps, ((0, Bp - B), (0, 0)))
    else:
        eps_p = eps

    args = (
        x_flat, eps_p,
        pk["w1"], pk["b1"], pk["wml"], pk["bml"],
        pk["wd1"], pk["bd1"], pk["wd2"], pk["bd2"],
    )

    grid = (Bp // TB,)
    in_specs = [
        pl.BlockSpec((TB, D), lambda i: (i, 0)),              # x tile (pipelined)
        pl.BlockSpec((TB, latent), lambda i: (i, 0)),         # eps tile (pipelined)
        pl.BlockSpec((D, hidden), lambda i: (0, 0)),          # w1   (VMEM-resident)
        pl.BlockSpec((1, hidden), lambda i: (0, 0)),          # b1
        pl.BlockSpec((hidden, 2 * latent), lambda i: (0, 0)),  # wml (fused mu|lv)
        pl.BlockSpec((1, 2 * latent), lambda i: (0, 0)),      # bml
        pl.BlockSpec((latent, hidden), lambda i: (0, 0)),     # wd1
        pl.BlockSpec((1, hidden), lambda i: (0, 0)),          # bd1
        pl.BlockSpec((hidden, D), lambda i: (0, 0)),          # wd2
        pl.BlockSpec((1, D), lambda i: (0, 0)),               # bd2
    ]
    out_specs = (
        pl.BlockSpec((TB, D), lambda i: (i, 0)),              # recon
        pl.BlockSpec((TB, 2 * latent), lambda i: (i, 0)),     # packed mu|logvar
    )
    out_shape = (
        jax.ShapeDtypeStruct((Bp, D), jnp.float32),
        jax.ShapeDtypeStruct((Bp, 2 * latent), jnp.float32),
    )

    recon_flat, mulv = pl.pallas_call(
        vae_kernel,
        grid=grid,
        in_specs=in_specs,
        out_specs=out_specs,
        out_shape=out_shape,
        compiler_params=pltpu.CompilerParams(
            dimension_semantics=("parallel",)),   # batch axis shards across TCs (v7x)
    )(*args)

    recon = recon_flat[:B].reshape(B, C, H, W)
    mu = mulv[:B, :latent]
    logvar = mulv[:B, latent:]
    return recon, mu, logvar


def init_params(key, in_dim, hidden, latent):
    """Deterministic small-normal init (synthetic weights, not a checkpoint)."""
    ks = jax.random.split(key, 6)
    s = 0.05
    return {
        "w1":  s * jax.random.normal(ks[0], (in_dim, hidden), jnp.float32),
        "b1":  jnp.zeros((1, hidden), jnp.float32),
        "wmu": s * jax.random.normal(ks[1], (hidden, latent), jnp.float32),
        "bmu": jnp.zeros((1, latent), jnp.float32),
        "wlv": s * jax.random.normal(ks[2], (hidden, latent), jnp.float32),
        "blv": jnp.zeros((1, latent), jnp.float32),
        "wd1": s * jax.random.normal(ks[3], (latent, hidden), jnp.float32),
        "bd1": jnp.zeros((1, hidden), jnp.float32),
        "wd2": s * jax.random.normal(ks[4], (hidden, in_dim), jnp.float32),
        "bd2": jnp.zeros((1, in_dim), jnp.float32),
    }


def vae_reference(x_nchw, eps, params):
    """Pure-JAX reference with the SAME bf16-matmul / f32-elementwise numerics."""
    B = x_nchw.shape[0]
    pk = pack_params(params)
    latent = pk["wd1"].shape[0]
    x = x_nchw.reshape(B, -1).astype(jnp.bfloat16)
    h = jnp.maximum(
        jnp.dot(x, pk["w1"], preferred_element_type=jnp.float32) + pk["b1"], 0.0)
    mulv = jnp.dot(h.astype(jnp.bfloat16), pk["wml"],
                   preferred_element_type=jnp.float32) + pk["bml"]
    mu, lv = mulv[:, :latent], mulv[:, latent:]
    z = mu + eps * jnp.exp(0.5 * lv)
    hd = jnp.maximum(
        jnp.dot(z.astype(jnp.bfloat16), pk["wd1"],
                preferred_element_type=jnp.float32) + pk["bd1"], 0.0)
    recon = jax.nn.sigmoid(
        jnp.dot(hd.astype(jnp.bfloat16), pk["wd2"],
                preferred_element_type=jnp.float32) + pk["bd2"])
    return recon.reshape(x_nchw.shape), mu, lv


if __name__ == "__main__":
    key = jax.random.PRNGKey(0)
    k_x, k_eps, k_p = jax.random.split(key, 3)

    B, C, H, W = 2, 4, 16, 16
    D = C * H * W          # 1024
    hidden = 32
    latent = 8

    x = jax.random.normal(k_x, (B, C, H, W), jnp.float32)
    # TODO(synk): eps could be generated in-kernel via pltpu.prng_seed/prng_random_bits;
    # kept as an explicit input for deterministic parity with the reference.
    eps = jax.random.normal(k_eps, (B, latent), jnp.float32)
    params = init_params(k_p, D, hidden, latent)

    recon, mu, logvar = vae_forward(x, eps, params)
    jax.block_until_ready((recon, mu, logvar))

    # correctness check against a pure-JAX reference with matching numerics
    r_ref, mu_ref, lv_ref = vae_reference(x, eps, params)
    assert jnp.allclose(recon, r_ref, atol=1e-3, rtol=1e-3)
    assert jnp.allclose(mu, mu_ref, atol=1e-3, rtol=1e-3)
    assert jnp.allclose(logvar, lv_ref, atol=1e-3, rtol=1e-3)
    assert recon.shape == (B, C, H, W) and mu.shape == (B, latent) and logvar.shape == (B, latent)

    print("KERNEL_OK")
</pallas_src>

<mosaic_0001>
module attributes {stable_mosaic.version = 11 : i64} {
  func.func @vae_kernel(%arg0: i32, %arg1: memref<8x1024xbf16, #tpu.memory_space<vmem>>, %arg2: memref<8x8xf32, #tpu.memory_space<vmem>>, %arg3: memref<1024x32xbf16, #tpu.memory_space<vmem>>, %arg4: memref<1x32xf32, #tpu.memory_space<vmem>>, %arg5: memref<32x16xbf16, #tpu.memory_space<vmem>>, %arg6: memref<1x16xf32, #tpu.memory_space<vmem>>, %arg7: memref<8x32xbf16, #tpu.memory_space<vmem>>, %arg8: memref<1x32xf32, #tpu.memory_space<vmem>>, %arg9: memref<32x1024xbf16, #tpu.memory_space<vmem>>, %arg10: memref<1x1024xf32, #tpu.memory_space<vmem>>, %arg11: memref<8x1024xf32, #tpu.memory_space<vmem>>, %arg12: memref<8x16xf32, #tpu.memory_space<vmem>>) attributes {dimension_semantics = [#tpu.dimension_semantics<parallel>], iteration_bounds = array<i64: 1>, scalar_prefetch = 0 : i64, scratch_operands = 0 : i64, tpu.core_type = #tpu.core_type<tc>, window_params = [{transform_indices = @transform_0, window_bounds = array<i64: 8, 1024>}, {transform_indices = @transform_1, window_bounds = array<i64: 8, 8>}, {pipeline_mode = #tpu.pipeline_mode<synchronous>, transform_indices = @transform_2, window_bounds = array<i64: 1024, 32>}, {pipeline_mode = #tpu.pipeline_mode<synchronous>, transform_indices = @transform_3, window_bounds = array<i64: 1, 32>}, {pipeline_mode = #tpu.pipeline_mode<synchronous>, transform_indices = @transform_4, window_bounds = array<i64: 32, 16>}, {pipeline_mode = #tpu.pipeline_mode<synchronous>, transform_indices = @transform_5, window_bounds = array<i64: 1, 16>}, {pipeline_mode = #tpu.pipeline_mode<synchronous>, transform_indices = @transform_6, window_bounds = array<i64: 8, 32>}, {pipeline_mode = #tpu.pipeline_mode<synchronous>, transform_indices = @transform_7, window_bounds = array<i64: 1, 32>}, {pipeline_mode = #tpu.pipeline_mode<synchronous>, transform_indices = @transform_8, window_bounds = array<i64: 32, 1024>}, {pipeline_mode = #tpu.pipeline_mode<synchronous>, transform_indices = @transform_9, window_bounds = array<i64: 1, 1024>}, {transform_indices = @transform_10, window_bounds = array<i64: 8, 1024>}, {transform_indices = @transform_11, window_bounds = array<i64: 8, 16>}]} {
    %c0 = arith.constant 0 : index
    %c0_0 = arith.constant 0 : index
    %0 = vector.load %arg1[%c0, %c0_0] : memref<8x1024xbf16, #tpu.memory_space<vmem>>, vector<8x1024xbf16>
    %c0_1 = arith.constant 0 : index
    %c0_2 = arith.constant 0 : index
    %1 = vector.load %arg3[%c0_1, %c0_2] : memref<1024x32xbf16, #tpu.memory_space<vmem>>, vector<1024x32xbf16>
    %cst = arith.constant dense<0.000000e+00> : vector<8x32xf32>
    %2 = tpu.matmul %0, %1, %cst {dimension_numbers = #tpu.dot_dimension_numbers<[1], [0], [0], [1], [0, 0, 1, 1], [], []>} : vector<8x1024xbf16>, vector<1024x32xbf16>, vector<8x32xf32> -> vector<8x32xf32>
    %c0_3 = arith.constant 0 : index
    %c0_4 = arith.constant 0 : index
    %3 = vector.load %arg4[%c0_3, %c0_4] : memref<1x32xf32, #tpu.memory_space<vmem>>, vector<1x32xf32>
    %4 = vector.broadcast %3 : vector<1x32xf32> to vector<8x32xf32>
    %5 = arith.addf %2, %4 : vector<8x32xf32>
    %cst_5 = arith.constant 0.000000e+00 : f32
    %6 = vector.broadcast %cst_5 : f32 to vector<8x32xf32>
    %7 = arith.maximumf %5, %6 : vector<8x32xf32>
    %8 = arith.truncf %7 : vector<8x32xf32> to vector<8x32xbf16>
    %c0_6 = arith.constant 0 : index
    %c0_7 = arith.constant 0 : index
    %9 = vector.load %arg5[%c0_6, %c0_7] : memref<32x16xbf16, #tpu.memory_space<vmem>>, vector<32x16xbf16>
    %cst_8 = arith.constant dense<0.000000e+00> : vector<8x16xf32>
    %10 = tpu.matmul %8, %9, %cst_8 {dimension_numbers = #tpu.dot_dimension_numbers<[1], [0], [0], [1], [0, 0, 1, 1], [], []>} : vector<8x32xbf16>, vector<32x16xbf16>, vector<8x16xf32> -> vector<8x16xf32>
    %c0_9 = arith.constant 0 : index
    %c0_10 = arith.constant 0 : index
    %11 = vector.load %arg6[%c0_9, %c0_10] : memref<1x16xf32, #tpu.memory_space<vmem>>, vector<1x16xf32>
    %12 = vector.broadcast %11 : vector<1x16xf32> to vector<8x16xf32>
    %13 = arith.addf %10, %12 : vector<8x16xf32>
    %14 = vector.extract_strided_slice %13 {offsets = [0, 0], sizes = [8, 8], strides = [1, 1]} : vector<8x16xf32> to vector<8x8xf32>
    %15 = vector.extract_strided_slice %13 {offsets = [0, 8], sizes = [8, 8], strides = [1, 1]} : vector<8x16xf32> to vector<8x8xf32>
    %c0_11 = arith.constant 0 : index
    %c0_12 = arith.constant 0 : index
    %16 = vector.load %arg2[%c0_11, %c0_12] : memref<8x8xf32, #tpu.memory_space<vmem>>, vector<8x8xf32>
    %cst_13 = arith.constant 5.000000e-01 : f32
    %17 = vector.broadcast %cst_13 : f32 to vector<8x8xf32>
    %18 = arith.mulf %17, %15 : vector<8x8xf32>
    %19 = math.exp %18 : vector<8x8xf32>
    %20 = arith.mulf %16, %19 : vector<8x8xf32>
    %21 = arith.addf %14, %20 : vector<8x8xf32>
    %22 = arith.truncf %21 : vector<8x8xf32> to vector<8x8xbf16>
    %c0_14 = arith.constant 0 : index
    %c0_15 = arith.constant 0 : index
    %23 = vector.load %arg7[%c0_14, %c0_15] : memref<8x32xbf16, #tpu.memory_space<vmem>>, vector<8x32xbf16>
    %cst_16 = arith.constant dense<0.000000e+00> : vector<8x32xf32>
    %24 = tpu.matmul %22, %23, %cst_16 {dimension_numbers = #tpu.dot_dimension_numbers<[1], [0], [0], [1], [0, 0, 1, 1], [], []>} : vector<8x8xbf16>, vector<8x32xbf16>, vector<8x32xf32> -> vector<8x32xf32>
    %c0_17 = arith.constant 0 : index
    %c0_18 = arith.constant 0 : index
    %25 = vector.load %arg8[%c0_17, %c0_18] : memref<1x32xf32, #tpu.memory_space<vmem>>, vector<1x32xf32>
    %26 = vector.broadcast %25 : vector<1x32xf32> to vector<8x32xf32>
    %27 = arith.addf %24, %26 : vector<8x32xf32>
    %cst_19 = arith.constant 0.000000e+00 : f32
    %28 = vector.broadcast %cst_19 : f32 to vector<8x32xf32>
    %29 = arith.maximumf %27, %28 : vector<8x32xf32>
    %30 = arith.truncf %29 : vector<8x32xf32> to vector<8x32xbf16>
    %c0_20 = arith.constant 0 : index
    %c0_21 = arith.constant 0 : index
    %31 = vector.load %arg9[%c0_20, %c0_21] : memref<32x1024xbf16, #tpu.memory_space<vmem>>, vector<32x1024xbf16>
    %cst_22 = arith.constant dense<0.000000e+00> : vector<8x1024xf32>
    %32 = tpu.matmul %30, %31, %cst_22 {dimension_numbers = #tpu.dot_dimension_numbers<[1], [0], [0], [1], [0, 0, 1, 1], [], []>} : vector<8x32xbf16>, vector<32x1024xbf16>, vector<8x1024xf32> -> vector<8x1024xf32>
    %c0_23 = arith.constant 0 : index
    %c0_24 = arith.constant 0 : index
    %33 = vector.load %arg10[%c0_23, %c0_24] : memref<1x1024xf32, #tpu.memory_space<vmem>>, vector<1x1024xf32>
    %34 = vector.broadcast %33 : vector<1x1024xf32> to vector<8x1024xf32>
    %35 = arith.addf %32, %34 : vector<8x1024xf32>
    %36 = arith.negf %35 : vector<8x1024xf32>
    %37 = math.exp %36 : vector<8x1024xf32>
    %cst_25 = arith.constant 1.000000e+00 : f32
    %38 = vector.broadcast %cst_25 : f32 to vector<8x1024xf32>
    %39 = arith.addf %38, %37 : vector<8x1024xf32>
    %40 = arith.divf %38, %39 : vector<8x1024xf32>
    %c0_26 = arith.constant 0 : index
    %c0_27 = arith.constant 0 : index
    %41 = vector.load %arg11[%c0_26, %c0_27] : memref<8x1024xf32, #tpu.memory_space<vmem>>, vector<8x1024xf32>
    tpu.vector_store %arg11[%c0_26, %c0_27], %40 {strides = array<i32>} : memref<8x1024xf32, #tpu.memory_space<vmem>>, vector<8x1024xf32>,
    %c0_28 = arith.constant 0 : index
    %c0_29 = arith.constant 0 : index
    %42 = vector.load %arg12[%c0_28, %c0_29] : memref<8x16xf32, #tpu.memory_space<vmem>>, vector<8x16xf32>
    tpu.vector_store %arg12[%c0_28, %c0_29], %13 {strides = array<i32>} : memref<8x16xf32, #tpu.memory_space<vmem>>, vector<8x16xf32>,
    return
  }
  func.func @transform_0(%arg0: i32) -> (i32, i32) {
    %c0_i32 = arith.constant 0 : i32
    %c0_i32_0 = arith.constant 0 : i32
    return %arg0, %c0_i32 : i32, i32
  }
  func.func @transform_1(%arg0: i32) -> (i32, i32) {
    %c0_i32 = arith.constant 0 : i32
    %c0_i32_0 = arith.constant 0 : i32
    return %arg0, %c0_i32 : i32, i32
  }
  func.func @transform_2(%arg0: i32) -> (i32, i32) {
    %c0_i32 = arith.constant 0 : i32
    %c0_i32_0 = arith.constant 0 : i32
    %c0_i32_1 = arith.constant 0 : i32
    return %c0_i32, %c0_i32_0 : i32, i32
  }
  func.func @transform_3(%arg0: i32) -> (i32, i32) {
    %c0_i32 = arith.constant 0 : i32
    %c0_i32_0 = arith.constant 0 : i32
    %c0_i32_1 = arith.constant 0 : i32
    return %c0_i32, %c0_i32_0 : i32, i32
  }
  func.func @transform_4(%arg0: i32) -> (i32, i32) {
    %c0_i32 = arith.constant 0 : i32
    %c0_i32_0 = arith.constant 0 : i32
    %c0_i32_1 = arith.constant 0 : i32
    return %c0_i32, %c0_i32_0 : i32, i32
  }
  func.func @transform_5(%arg0: i32) -> (i32, i32) {
    %c0_i32 = arith.constant 0 : i32
    %c0_i32_0 = arith.constant 0 : i32
    %c0_i32_1 = arith.constant 0 : i32
    return %c0_i32, %c0_i32_0 : i32, i32
  }
  func.func @transform_6(%arg0: i32) -> (i32, i32) {
    %c0_i32 = arith.constant 0 : i32
    %c0_i32_0 = arith.constant 0 : i32
    %c0_i32_1 = arith.constant 0 : i32
    return %c0_i32, %c0_i32_0 : i32, i32
  }
  func.func @transform_7(%arg0: i32) -> (i32, i32) {
    %c0_i32 = arith.constant 0 : i32
    %c0_i32_0 = arith.constant 0 : i32
    %c0_i32_1 = arith.constant 0 : i32
    return %c0_i32, %c0_i32_0 : i32, i32
  }
  func.func @transform_8(%arg0: i32) -> (i32, i32) {
    %c0_i32 = arith.constant 0 : i32
    %c0_i32_0 = arith.constant 0 : i32
    %c0_i32_1 = arith.constant 0 : i32
    return %c0_i32, %c0_i32_0 : i32, i32
  }
  func.func @transform_9(%arg0: i32) -> (i32, i32) {
    %c0_i32 = arith.constant 0 : i32
    %c0_i32_0 = arith.constant 0 : i32
    %c0_i32_1 = arith.constant 0 : i32
    return %c0_i32, %c0_i32_0 : i32, i32
  }
  func.func @transform_10(%arg0: i32) -> (i32, i32) {
    %c0_i32 = arith.constant 0 : i32
    %c0_i32_0 = arith.constant 0 : i32
    return %arg0, %c0_i32 : i32, i32
  }
  func.func @transform_11(%arg0: i32) -> (i32, i32) {
    %c0_i32 = arith.constant 0 : i32
    %c0_i32_0 = arith.constant 0 : i32
    return %arg0, %c0_i32 : i32, i32
  }
}

</mosaic_0001>

<llo_original>
// kernel: tpu_custom_call.1
$region0: #{tpu_custom_call.1}
  #allocation0 [shape = 'u32[]', space=smem, size = 0x4, offset = 0x4, fixed_abs, tag = 'smem constant byte address 0x4 - core index']
  #allocation1 [shape = 'u32[144,128]{1,0:T(1,128)}', space=vmem, size = 0x12000, scoped, tag = 'internal scratch']
  %s0 = inlined_call_operand.vmem [shape: bf16[8,1024], index: 0, kind: input, shape index: {}]
  %s1 = inlined_call_operand.vmem [shape: f32[8,8], index: 1, kind: input, shape index: {}]
  %s2 = inlined_call_operand.vmem [shape: bf16[1024,32], index: 2, kind: input, shape index: {}]
  %s3 = inlined_call_operand.vmem [shape: f32[1,32], index: 3, kind: input, shape index: {}]
  %s4 = inlined_call_operand.vmem [shape: bf16[32,16], index: 4, kind: input, shape index: {}]
  %s5 = inlined_call_operand.vmem [shape: f32[1,16], index: 5, kind: input, shape index: {}]
  %s6 = inlined_call_operand.vmem [shape: bf16[8,32], index: 6, kind: input, shape index: {}]
  %s7 = inlined_call_operand.vmem [shape: f32[1,32], index: 7, kind: input, shape index: {}]
  %s8 = inlined_call_operand.vmem [shape: bf16[32,1024], index: 8, kind: input, shape index: {}]
  %s9 = inlined_call_operand.vmem [shape: f32[1,1024], index: 9, kind: input, shape index: {}]
  %s10 = inlined_call_operand.hbm [shape: f32[8,1024], index: 10, kind: output, shape index: {0}]
  %s11 = inlined_call_operand.hbm [shape: f32[8,16], index: 11, kind: output, shape index: {1}]
  %12 = xla_tuple %s10, %s11
  %s13 = sld [smem:[#allocation0]]
  $region58: #{tpu_custom_call.1} parent=0
    _
  %s15 = ssub.s32 1, %s13
  %s16 = scalar_select 0, %s15, %s13
  $region1: #{tpu_custom_call.1} parent=0
    #allocation2 [shape = 'u8[32768]{0}', space=vmem, size = 0x8000, scoped, tag = 'output window, operand 0, single buffered']
    #allocation3 [shape = 's32[1]{0}', space=sflag, size = 0x4, scoped, tag = 'scoped memory for tpu_custom_call.1']
    #allocation4 [shape = 'u8[4096]{0}', space=vmem, size = 0x1000, scoped, tag = 'output window, operand 1, single buffered']
    #allocation5 [shape = 's32[1]{0}', space=sflag, size = 0x4, scoped, tag = 'scoped memory for tpu_custom_call.1']
    %17 = vsyncpa [#allocation3], 0
    %18 = vsyncpa [#allocation5], 0
    // Predicated region
    $region2: #{tpu_custom_call.1} parent=1 // pred_check
      _
    $region3: #{tpu_custom_call.1} parent=1 // pred_check_branch
      %20 = sbr.rel (0) target = $region5
    $region4: #{tpu_custom_call.1} parent=1 // pred_region
      _
    $region5: #{tpu_custom_call.1} parent=1 // pred_fallthru
      _
    // Predicated region
    $region6: #{tpu_custom_call.1} parent=1 // pred_check
      _
    $region7: #{tpu_custom_call.1} parent=1 // pred_check_branch
      %22 = sbr.rel (0) target = $region9
    $region8: #{tpu_custom_call.1} parent=1 // pred_region
      _
    $region9: #{tpu_custom_call.1} parent=1 // pred_fallthru
      _
    // Predicated region
    $region10: #{tpu_custom_call.1} parent=1 // pred_check
      _
    $region11: #{tpu_custom_call.1} parent=1 // pred_check_branch
      %24 = sbr.rel (0) target = $region13
    $region12: #{tpu_custom_call.1} parent=1 // pred_region
      _
    $region13: #{tpu_custom_call.1} parent=1 // pred_fallthru
      _
    // Predicated region
    $region14: #{tpu_custom_call.1} parent=1 // pred_check
      _
    $region15: #{tpu_custom_call.1} parent=1 // pred_check_branch
      %26 = sbr.rel (0) target = $region17
    $region16: #{tpu_custom_call.1} parent=1 // pred_region
      _
    $region17: #{tpu_custom_call.1} parent=1 // pred_fallthru
      _
    // Predicated region
    $region18: #{tpu_custom_call.1} parent=1 // pred_check
      _
    $region19: #{tpu_custom_call.1} parent=1 // pred_check_branch
      %28 = sbr.rel (0) target = $region21
    $region20: #{tpu_custom_call.1} parent=1 // pred_region
      _
    $region21: #{tpu_custom_call.1} parent=1 // pred_fallthru
      _
    // Predicated region
    $region22: #{tpu_custom_call.1} parent=1 // pred_check
      _
    $region23: #{tpu_custom_call.1} parent=1 // pred_check_branch
      %30 = sbr.rel (0) target = $region25
    $region24: #{tpu_custom_call.1} parent=1 // pred_region
      _
    $region25: #{tpu_custom_call.1} parent=1 // pred_fallthru
      _
    // Predicated region
    $region26: #{tpu_custom_call.1} parent=1 // pred_check
      _
    $region27: #{tpu_custom_call.1} parent=1 // pred_check_branch
      %32 = sbr.rel (0) target = $region29
    $region28: #{tpu_custom_call.1} parent=1 // pred_region
      _
    $region29: #{tpu_custom_call.1} parent=1 // pred_fallthru
      _
    // Predicated region
    $region30: #{tpu_custom_call.1} parent=1 // pred_check
      _
    $region31: #{tpu_custom_call.1} parent=1 // pred_check_branch
      %34 = sbr.rel (0) target = $region33
    $region32: #{tpu_custom_call.1} parent=1 // pred_region
      _
    $region33: #{tpu_custom_call.1} parent=1 // pred_fallthru
      _
    // Predicated region
    $region34: #{tpu_custom_call.1} parent=1 // pred_check
      _
    $region35: #{tpu_custom_call.1} parent=1 // pred_check_branch
      %36 = sbr.rel (0) target = $region37
    $region36: #{tpu_custom_call.1} parent=1 // pred_region
      _
    $region37: #{tpu_custom_call.1} parent=1 // pred_fallthru
      _
    // Predicated region
    $region38: #{tpu_custom_call.1} parent=1 // pred_check
      _
    $region39: #{tpu_custom_call.1} parent=1 // pred_check_branch
      %38 = sbr.rel (0) target = $region41
    $region40: #{tpu_custom_call.1} parent=1 // pred_region
      _
    $region41: #{tpu_custom_call.1} parent=1 // pred_fallthru
      _
    %v40 = vld [vmem:[%s0] sm:$0xff]
    %v41 = vld [vmem:[%s0 + $0x8] sm:$0xff]
    %v42 = vld [vmem:[%s0 + $0x10] sm:$0xff]
    %v43 = vld [vmem:[%s0 + $0x18] sm:$0xff]
    %v44 = vld [vmem:[%s2] sm:$0xf]
    %v45 = vld [vmem:[%s2 + $0x4] sm:$0xf]
    %v46 = vld [vmem:[%s2 + $0x8] sm:$0xf]
    %v47 = vld [vmem:[%s2 + $0xc] sm:$0xf]
    %v48 = vld [vmem:[%s2 + $0x10] sm:$0xf]
    %v49 = vld [vmem:[%s2 + $0x14] sm:$0xf]
    %v50 = vld [vmem:[%s2 + $0x18] sm:$0xf]
    %v51 = vld [vmem:[%s2 + $0x1c] sm:$0xf]
    %v52 = vld [vmem:[%s2 + $0x20] sm:$0xf]
    %v53 = vld [vmem:[%s2 + $0x24] sm:$0xf]
    %v54 = vld [vmem:[%s2 + $0x28] sm:$0xf]
    %v55 = vld [vmem:[%s2 + $0x2c] sm:$0xf]
    %v56 = vld [vmem:[%s2 + $0x30] sm:$0xf]
    %v57 = vld [vmem:[%s2 + $0x34] sm:$0xf]
    %v58 = vld [vmem:[%s2 + $0x38] sm:$0xf]
    %v59 = vld [vmem:[%s2 + $0x3c] sm:$0xf]
    %v60 = vld [vmem:[%s2 + $0x40] sm:$0xf]
    %v61 = vld [vmem:[%s2 + $0x44] sm:$0xf]
    %v62 = vld [vmem:[%s2 + $0x48] sm:$0xf]
    %v63 = vld [vmem:[%s2 + $0x4c] sm:$0xf]
    %v64 = vld [vmem:[%s2 + $0x50] sm:$0xf]
    %v65 = vld [vmem:[%s2 + $0x54] sm:$0xf]
    %v66 = vld [vmem:[%s2 + $0x58] sm:$0xf]
    %v67 = vld [vmem:[%s2 + $0x5c] sm:$0xf]
    %v68 = vld [vmem:[%s2 + $0x60] sm:$0xf]
    %v69 = vld [vmem:[%s2 + $0x64] sm:$0xf]
    %v70 = vld [vmem:[%s2 + $0x68] sm:$0xf]
    %v71 = vld [vmem:[%s2 + $0x6c] sm:$0xf]
    %v72 = vld [vmem:[%s2 + $0x70] sm:$0xf]
    %v73 = vld [vmem:[%s2 + $0x74] sm:$0xf]
    %v74 = vld [vmem:[%s2 + $0x78] sm:$0xf]
    %v75 = vld [vmem:[%s2 + $0x7c] sm:$0xf]
    %v76 = vld [vmem:[%s2 + $0x80] sm:$0xf]
    %v77 = vld [vmem:[%s2 + $0x84] sm:$0xf]
    %v78 = vld [vmem:[%s2 + $0x88] sm:$0xf]
    %v79 = vld [vmem:[%s2 + $0x8c] sm:$0xf]
    %v80 = vld [vmem:[%s2 + $0x90] sm:$0xf]
    %v81 = vld [vmem:[%s2 + $0x94] sm:$0xf]
    %v82 = vld [vmem:[%s2 + $0x98] sm:$0xf]
    %v83 = vld [vmem:[%s2 + $0x9c] sm:$0xf]
    %v84 = vld [vmem:[%s2 + $0xa0] sm:$0xf]
    %v85 = vld [vmem:[%s2 + $0xa4] sm:$0xf]
    %v86 = vld [vmem:[%s2 + $0xa8] sm:$0xf]
    %v87 = vld [vmem:[%s2 + $0xac] sm:$0xf]
    %v88 = vld [vmem:[%s2 + $0xb0] sm:$0xf]
    %v89 = vld [vmem:[%s2 + $0xb4] sm:$0xf]
    %v90 = vld [vmem:[%s2 + $0xb8] sm:$0xf]
    %v91 = vld [vmem:[%s2 + $0xbc] sm:$0xf]
    %v92 = vld [vmem:[%s2 + $0xc0] sm:$0xf]
    %v93 = vld [vmem:[%s2 + $0xc4] sm:$0xf]
    %v94 = vld [vmem:[%s2 + $0xc8] sm:$0xf]
    %v95 = vld [vmem:[%s2 + $0xcc] sm:$0xf]
    %v96 = vld [vmem:[%s2 + $0xd0] sm:$0xf]
    %v97 = vld [vmem:[%s2 + $0xd4] sm:$0xf]
    %v98 = vld [vmem:[%s2 + $0xd8] sm:$0xf]
    %v99 = vld [vmem:[%s2 + $0xdc] sm:$0xf]
    %v100 = vld [vmem:[%s2 + $0xe0] sm:$0xf]
    %v101 = vld [vmem:[%s2 + $0xe4] sm:$0xf]
    %v102 = vld [vmem:[%s2 + $0xe8] sm:$0xf]
    %v103 = vld [vmem:[%s2 + $0xec] sm:$0xf]
    %v104 = vld [vmem:[%s2 + $0xf0] sm:$0xf]
    %v105 = vld [vmem:[%s2 + $0xf4] sm:$0xf]
    %v106 = vld [vmem:[%s2 + $0xf8] sm:$0xf]
    %v107 = vld [vmem:[%s2 + $0xfc] sm:$0xf]
    %v108 = vld [vmem:[%s2 + $0x100] sm:$0xf]
    %v109 = vld [vmem:[%s2 + $0x104] sm:$0xf]
    %v110 = vld [vmem:[%s2 + $0x108] sm:$0xf]
    %v111 = vld [vmem:[%s2 + $0x10c] sm:$0xf]
    %v112 = vld [vmem:[%s2 + $0x110] sm:$0xf]
    %v113 = vld [vmem:[%s2 + $0x114] sm:$0xf]
    %v114 = vld [vmem:[%s2 + $0x118] sm:$0xf]
    %v115 = vld [vmem:[%s2 + $0x11c] sm:$0xf]
    %v116 = vld [vmem:[%s2 + $0x120] sm:$0xf]
    %v117 = vld [vmem:[%s2 + $0x124] sm:$0xf]
    %v118 = vld [vmem:[%s2 + $0x128] sm:$0xf]
    %v119 = vld [vmem:[%s2 + $0x12c] sm:$0xf]
    %v120 = vld [vmem:[%s2 + $0x130] sm:$0xf]
    %v121 = vld [vmem:[%s2 + $0x134] sm:$0xf]
    %v122 = vld [vmem:[%s2 + $0x138] sm:$0xf]
    %v123 = vld [vmem:[%s2 + $0x13c] sm:$0xf]
    %v124 = vld [vmem:[%s2 + $0x140] sm:$0xf]
    %v125 = vld [vmem:[%s2 + $0x144] sm:$0xf]
    %v126 = vld [vmem:[%s2 + $0x148] sm:$0xf]
    %v127 = vld [vmem:[%s2 + $0x14c] sm:$0xf]
    %v128 = vld [vmem:[%s2 + $0x150] sm:$0xf]
    %v129 = vld [vmem:[%s2 + $0x154] sm:$0xf]
    %v130 = vld [vmem:[%s2 + $0x158] sm:$0xf]
    %v131 = vld [vmem:[%s2 + $0x15c] sm:$0xf]
    %v132 = vld [vmem:[%s2 + $0x160] sm:$0xf]
    %v133 = vld [vmem:[%s2 + $0x164] sm:$0xf]
    %v134 = vld [vmem:[%s2 + $0x168] sm:$0xf]
    %v135 = vld [vmem:[%s2 + $0x16c] sm:$0xf]
    %v136 = vld [vmem:[%s2 + $0x170] sm:$0xf]
    %v137 = vld [vmem:[%s2 + $0x174] sm:$0xf]
    %v138 = vld [vmem:[%s2 + $0x178] sm:$0xf]
    %v139 = vld [vmem:[%s2 + $0x17c] sm:$0xf]
    %v140 = vld [vmem:[%s2 + $0x180] sm:$0xf]
    %v141 = vld [vmem:[%s2 + $0x184] sm:$0xf]
    %v142 = vld [vmem:[%s2 + $0x188] sm:$0xf]
    %v143 = vld [vmem:[%s2 + $0x18c] sm:$0xf]
    %v144 = vld [vmem:[%s2 + $0x190] sm:$0xf]
    %v145 = vld [vmem:[%s2 + $0x194] sm:$0xf]
    %v146 = vld [vmem:[%s2 + $0x198] sm:$0xf]
    %v147 = vld [vmem:[%s2 + $0x19c] sm:$0xf]
    %v148 = vld [vmem:[%s2 + $0x1a0] sm:$0xf]
    %v149 = vld [vmem:[%s2 + $0x1a4] sm:$0xf]
    %v150 = vld [vmem:[%s2 + $0x1a8] sm:$0xf]
    %v151 = vld [vmem:[%s2 + $0x1ac] sm:$0xf]
    %v152 = vld [vmem:[%s2 + $0x1b0] sm:$0xf]
    %v153 = vld [vmem:[%s2 + $0x1b4] sm:$0xf]
    %v154 = vld [vmem:[%s2 + $0x1b8] sm:$0xf]
    %v155 = vld [vmem:[%s2 + $0x1bc] sm:$0xf]
    %v156 = vld [vmem:[%s2 + $0x1c0] sm:$0xf]
    %v157 = vld [vmem:[%s2 + $0x1c4] sm:$0xf]
    %v158 = vld [vmem:[%s2 + $0x1c8] sm:$0xf]
    %v159 = vld [vmem:[%s2 + $0x1cc] sm:$0xf]
    %v160 = vld [vmem:[%s2 + $0x1d0] sm:$0xf]
    %v161 = vld [vmem:[%s2 + $0x1d4] sm:$0xf]
    %v162 = vld [vmem:[%s2 + $0x1d8] sm:$0xf]
    %v163 = vld [vmem:[%s2 + $0x1dc] sm:$0xf]
    %v164 = vld [vmem:[%s2 + $0x1e0] sm:$0xf]
    %v165 = vld [vmem:[%s2 + $0x1e4] sm:$0xf]
    %v166 = vld [vmem:[%s2 + $0x1e8] sm:$0xf]
    %v167 = vld [vmem:[%s2 + $0x1ec] sm:$0xf]
    %v168 = vld [vmem:[%s2 + $0x1f0] sm:$0xf]
    %v169 = vld [vmem:[%s2 + $0x1f4] sm:$0xf]
    %v170 = vld [vmem:[%s2 + $0x1f8] sm:$0xf]
    %v171 = vld [vmem:[%s2 + $0x1fc] sm:$0xf]
    %v172 = vld [vmem:[%s3] sm:$0x1]
    %v174 = vlaneseq
    %v175 = vshrl.u32 %v174, 7
    %v176 = vsub.s32 0, %v175
    %v177 = vrot.slane %v172, %v176
    %v183 = vunpack.c.l.b16 %v40
    %v184 = vunpack.c.h.b16 %v40
    %v185 = vunpack.c.l.b16 %v41
    %v186 = vunpack.c.h.b16 %v41
    %v187 = vunpack.c.l.b16 %v42
    %v188 = vunpack.c.h.b16 %v42
    %v189 = vunpack.c.l.b16 %v43
    %v190 = vunpack.c.h.b16 %v43
    %v191 = vpack.c.b16 %v183, %v183
    %v192 = vpack.c.b16 %v184, %v184
    %v193 = vpack.c.b16 %v185, %v185
    %v194 = vpack.c.b16 %v186, %v186
    %v195 = vpack.c.b16 %v187, %v187
    %v196 = vpack.c.b16 %v188, %v188
    %v197 = vpack.c.b16 %v189, %v189
    %v198 = vpack.c.b16 %v190, %v190
    %v335 = vunpack.c.l.b16 %v44
    %v336 = vunpack.c.l.b16 %v45
    %v337 = vunpack.c.l.b16 %v46
    %v338 = vunpack.c.l.b16 %v47
    %v339 = vunpack.c.l.b16 %v48
    %v340 = vunpack.c.l.b16 %v49
    %v341 = vunpack.c.l.b16 %v50
    %v342 = vunpack.c.l.b16 %v51
    %v343 = vunpack.c.l.b16 %v52
    %v344 = vunpack.c.l.b16 %v53
    %v345 = vunpack.c.l.b16 %v54
    %v346 = vunpack.c.l.b16 %v55
    %v347 = vunpack.c.l.b16 %v56
    %v348 = vunpack.c.l.b16 %v57
    %v349 = vunpack.c.l.b16 %v58
    %v350 = vunpack.c.l.b16 %v59
    %v351 = vunpack.c.l.b16 %v60
    %v352 = vunpack.c.l.b16 %v61
    %v353 = vunpack.c.l.b16 %v62
    %v354 = vunpack.c.l.b16 %v63
    %v355 = vunpack.c.l.b16 %v64
    %v356 = vunpack.c.l.b16 %v65
    %v357 = vunpack.c.l.b16 %v66
    %v358 = vunpack.c.l.b16 %v67
    %v359 = vunpack.c.l.b16 %v68
    %v360 = vunpack.c.l.b16 %v69
    %v361 = vunpack.c.l.b16 %v70
    %v362 = vunpack.c.l.b16 %v71
    %v363 = vunpack.c.l.b16 %v72
    %v364 = vunpack.c.l.b16 %v73
    %v365 = vunpack.c.l.b16 %v74
    %v366 = vunpack.c.l.b16 %v75
    %v367 = vunpack.c.l.b16 %v76
    %v368 = vunpack.c.l.b16 %v77
    %v369 = vunpack.c.l.b16 %v78
    %v370 = vunpack.c.l.b16 %v79
    %v371 = vunpack.c.l.b16 %v80
    %v372 = vunpack.c.l.b16 %v81
    %v373 = vunpack.c.l.b16 %v82
    %v374 = vunpack.c.l.b16 %v83
    %v375 = vunpack.c.l.b16 %v84
    %v376 = vunpack.c.l.b16 %v85
    %v377 = vunpack.c.l.b16 %v86
    %v378 = vunpack.c.l.b16 %v87
    %v379 = vunpack.c.l.b16 %v88
    %v380 = vunpack.c.l.b16 %v89
    %v381 = vunpack.c.l.b16 %v90
    %v382 = vunpack.c.l.b16 %v91
    %v383 = vunpack.c.l.b16 %v92
    %v384 = vunpack.c.l.b16 %v93
    %v385 = vunpack.c.l.b16 %v94
    %v386 = vunpack.c.l.b16 %v95
    %v387 = vunpack.c.l.b16 %v96
    %v388 = vunpack.c.l.b16 %v97
    %v389 = vunpack.c.l.b16 %v98
    %v390 = vunpack.c.l.b16 %v99
    %v391 = vunpack.c.l.b16 %v100
    %v392 = vunpack.c.l.b16 %v101
    %v393 = vunpack.c.l.b16 %v102
    %v394 = vunpack.c.l.b16 %v103
    %v395 = vunpack.c.l.b16 %v104
    %v396 = vunpack.c.l.b16 %v105
    %v397 = vunpack.c.l.b16 %v106
    %v398 = vunpack.c.l.b16 %v107
    %v399 = vunpack.c.l.b16 %v108
    %v400 = vunpack.c.l.b16 %v109
    %v401 = vunpack.c.l.b16 %v110
    %v402 = vunpack.c.l.b16 %v111
    %v403 = vunpack.c.l.b16 %v112
    %v404 = vunpack.c.l.b16 %v113
    %v405 = vunpack.c.l.b16 %v114
    %v406 = vunpack.c.l.b16 %v115
    %v407 = vunpack.c.l.b16 %v116
    %v408 = vunpack.c.l.b16 %v117
    %v409 = vunpack.c.l.b16 %v118
    %v410 = vunpack.c.l.b16 %v119
    %v411 = vunpack.c.l.b16 %v120
    %v412 = vunpack.c.l.b16 %v121
    %v413 = vunpack.c.l.b16 %v122
    %v414 = vunpack.c.l.b16 %v123
    %v415 = vunpack.c.l.b16 %v124
    %v416 = vunpack.c.l.b16 %v125
    %v417 = vunpack.c.l.b16 %v126
    %v418 = vunpack.c.l.b16 %v127
    %v419 = vunpack.c.l.b16 %v128
    %v420 = vunpack.c.l.b16 %v129
    %v421 = vunpack.c.l.b16 %v130
    %v422 = vunpack.c.l.b16 %v131
    %v423 = vunpack.c.l.b16 %v132
    %v424 = vunpack.c.l.b16 %v133
    %v425 = vunpack.c.l.b16 %v134
    %v426 = vunpack.c.l.b16 %v135
    %v427 = vunpack.c.l.b16 %v136
    %v428 = vunpack.c.l.b16 %v137
    %v429 = vunpack.c.l.b16 %v138
    %v430 = vunpack.c.l.b16 %v139
    %v431 = vunpack.c.l.b16 %v140
    %v432 = vunpack.c.l.b16 %v141
    %v433 = vunpack.c.l.b16 %v142
    %v434 = vunpack.c.l.b16 %v143
    %v435 = vunpack.c.l.b16 %v144
    %v436 = vunpack.c.l.b16 %v145
    %v437 = vunpack.c.l.b16 %v146
    %v438 = vunpack.c.l.b16 %v147
    %v439 = vunpack.c.l.b16 %v148
    %v440 = vunpack.c.l.b16 %v149
    %v441 = vunpack.c.l.b16 %v150
    %v442 = vunpack.c.l.b16 %v151
    %v443 = vunpack.c.l.b16 %v152
    %v444 = vunpack.c.l.b16 %v153
    %v445 = vunpack.c.l.b16 %v154
    %v446 = vunpack.c.l.b16 %v155
    %v447 = vunpack.c.l.b16 %v156
    %v448 = vunpack.c.l.b16 %v157
    %v449 = vunpack.c.l.b16 %v158
    %v450 = vunpack.c.l.b16 %v159
    %v451 = vunpack.c.l.b16 %v160
    %v452 = vunpack.c.l.b16 %v161
    %v453 = vunpack.c.l.b16 %v162
    %v454 = vunpack.c.l.b16 %v163
    %v455 = vunpack.c.l.b16 %v164
    %v456 = vunpack.c.l.b16 %v165
    %v457 = vunpack.c.l.b16 %v166
    %v458 = vunpack.c.l.b16 %v167
    %v459 = vunpack.c.l.b16 %v168
    %v460 = vunpack.c.l.b16 %v169
    %v461 = vunpack.c.l.b16 %v170
    %v462 = vunpack.c.l.b16 %v171
    %v463 = vpack.c.b16 %v336, %v335
    %v464 = vpack.c.b16 %v338, %v337
    %v465 = vpack.c.b16 %v340, %v339
    %v466 = vpack.c.b16 %v342, %v341
    %v467 = vpack.c.b16 %v344, %v343
    %v468 = vpack.c.b16 %v346, %v345
    %v469 = vpack.c.b16 %v348, %v347
    %v470 = vpack.c.b16 %v350, %v349
    %v471 = vpack.c.b16 %v352, %v351
    %v472 = vpack.c.b16 %v354, %v353
    %v473 = vpack.c.b16 %v356, %v355
    %v474 = vpack.c.b16 %v358, %v357
    %v475 = vpack.c.b16 %v360, %v359
    %v476 = vpack.c.b16 %v362, %v361
    %v477 = vpack.c.b16 %v364, %v363
    %v478 = vpack.c.b16 %v366, %v365
    %v479 = vpack.c.b16 %v368, %v367
    %v480 = vpack.c.b16 %v370, %v369
    %v481 = vpack.c.b16 %v372, %v371
    %v482 = vpack.c.b16 %v374, %v373
    %v483 = vpack.c.b16 %v376, %v375
    %v484 = vpack.c.b16 %v378, %v377
    %v485 = vpack.c.b16 %v380, %v379
    %v486 = vpack.c.b16 %v382, %v381
    %v487 = vpack.c.b16 %v384, %v383
    %v488 = vpack.c.b16 %v386, %v385
    %v489 = vpack.c.b16 %v388, %v387
    %v490 = vpack.c.b16 %v390, %v389
    %v491 = vpack.c.b16 %v392, %v391
    %v492 = vpack.c.b16 %v394, %v393
    %v493 = vpack.c.b16 %v396, %v395
    %v494 = vpack.c.b16 %v398, %v397
    %v495 = vpack.c.b16 %v400, %v399
    %v496 = vpack.c.b16 %v402, %v401
    %v497 = vpack.c.b16 %v404, %v403
    %v498 = vpack.c.b16 %v406, %v405
    %v499 = vpack.c.b16 %v408, %v407
    %v500 = vpack.c.b16 %v410, %v409
    %v501 = vpack.c.b16 %v412, %v411
    %v502 = vpack.c.b16 %v414, %v413
    %v503 = vpack.c.b16 %v416, %v415
    %v504 = vpack.c.b16 %v418, %v417
    %v505 = vpack.c.b16 %v420, %v419
    %v506 = vpack.c.b16 %v422, %v421
    %v507 = vpack.c.b16 %v424, %v423
    %v508 = vpack.c.b16 %v426, %v425
    %v509 = vpack.c.b16 %v428, %v427
    %v510 = vpack.c.b16 %v430, %v429
    %v511 = vpack.c.b16 %v432, %v431
    %v512 = vpack.c.b16 %v434, %v433
    %v513 = vpack.c.b16 %v436, %v435
    %v514 = vpack.c.b16 %v438, %v437
    %v515 = vpack.c.b16 %v440, %v439
    %v516 = vpack.c.b16 %v442, %v441
    %v517 = vpack.c.b16 %v444, %v443
    %v518 = vpack.c.b16 %v446, %v445
    %v519 = vpack.c.b16 %v448, %v447
    %v520 = vpack.c.b16 %v450, %v449
    %v521 = vpack.c.b16 %v452, %v451
    %v522 = vpack.c.b16 %v454, %v453
    %v523 = vpack.c.b16 %v456, %v455
    %v524 = vpack.c.b16 %v458, %v457
    %v525 = vpack.c.b16 %v460, %v459
    %v526 = vpack.c.b16 %v462, %v461
    %591 = vmatprep.subr.bf16.mxu0 0
    %592 = vmatpush1.bf16.msra.mxu0 %v470
    %593 = vmatprep.subr.bf16.mxu0 0
    %594 = vmatpush1.bf16.msra.mxu0 %v469
    %595 = vmatprep.subr.bf16.mxu0 0
    %596 = vmatpush1.bf16.msra.mxu0 %v468
    %597 = vmatprep.subr.bf16.mxu0 0
    %598 = vmatpush1.bf16.msra.mxu0 %v467
    %599 = vmatprep.subr.bf16.mxu0 0
    %600 = vmatpush1.bf16.msra.mxu0 %v466
    %601 = vmatprep.subr.bf16.mxu0 0
    %602 = vmatpush1.bf16.msra.mxu0 %v465
    %603 = vmatprep.subr.bf16.mxu0 0
    %604 = vmatpush1.bf16.msra.mxu0 %v464
    %605 = vmatprep.subr.bf16.mxu0 0
    %606 = vmatpush1.bf16.msra.mxu0 %v463
    %607 = vmatprep.subr.bf16.mxu0 0
    %608 = vmatpush2.bf16.msra.mxu0 %v478
    %609 = vmatprep.subr.bf16.mxu0 0
    %610 = vmatpush2.bf16.msra.mxu0 %v477
    %611 = vmatprep.subr.bf16.mxu0 0
    %612 = vmatpush2.bf16.msra.mxu0 %v476
    %613 = vmatprep.subr.bf16.mxu0 0
    %614 = vmatpush2.bf16.msra.mxu0 %v475
    %615 = vmatprep.subr.bf16.mxu0 0
    %616 = vmatpush2.bf16.msra.mxu0 %v474
    %617 = vmatprep.subr.bf16.mxu0 0
    %618 = vmatpush2.bf16.msra.mxu0 %v473
    %619 = vmatprep.subr.bf16.mxu0 0
    %620 = vmatpush2.bf16.msra.mxu0 %v472
    %621 = vmatprep.subr.bf16.mxu0 0
    %622 = vmatpush2.bf16.msra.mxu0 %v471
    %623 = vmatprep.mubr.bf16.mxu0 %v192
    %624 = vmatmul.mubr.bf16.gmra.mxu0 %v191
    %v625 = vpop.f32.mrf.mxu0
    %v626 = vadd.f32 %v177, %v625
    %v627 = vpop.f32.mrf.mxu0
    %v628 = vpop.f32.mrf.mxu0
    %v629 = vpop.f32.mrf.mxu0
    %630 = vdwg.mxu0
    %631 = vmatprep.subr.bf16.mxu0 0
    %632 = vmatpush1.bf16.msra.mxu0 %v486
    %633 = vmatprep.subr.bf16.mxu0 0
    %634 = vmatpush1.bf16.msra.mxu0 %v485
    %635 = vmatprep.subr.bf16.mxu0 0
    %636 = vmatpush1.bf16.msra.mxu0 %v484
    %637 = vmatprep.subr.bf16.mxu0 0
    %638 = vmatpush1.bf16.msra.mxu0 %v483
    %639 = vmatprep.subr.bf16.mxu0 0
    %640 = vmatpush1.bf16.msra.mxu0 %v482
    %641 = vmatprep.subr.bf16.mxu0 0
    %642 = vmatpush1.bf16.msra.mxu0 %v481
    %643 = vmatprep.subr.bf16.mxu0 0
    %644 = vmatpush1.bf16.msra.mxu0 %v480
    %645 = vmatprep.subr.bf16.mxu0 0
    %646 = vmatpush1.bf16.msra.mxu0 %v479
    %647 = vmatprep.subr.bf16.mxu0 0
    %648 = vmatpush2.bf16.msra.mxu0 %v494
    %649 = vmatprep.subr.bf16.mxu0 0
    %650 = vmatpush2.bf16.msra.mxu0 %v493
    %651 = vmatprep.subr.bf16.mxu0 0
    %652 = vmatpush2.bf16.msra.mxu0 %v492
    %653 = vmatprep.subr.bf16.mxu0 0
    %654 = vmatpush2.bf16.msra.mxu0 %v491
    %655 = vmatprep.subr.bf16.mxu0 0
    %656 = vmatpush2.bf16.msra.mxu0 %v490
    %657 = vmatprep.subr.bf16.mxu0 0
    %658 = vmatpush2.bf16.msra.mxu0 %v489
    %659 = vmatprep.subr.bf16.mxu0 0
    %660 = vmatpush2.bf16.msra.mxu0 %v488
    %661 = vmatprep.subr.bf16.mxu0 0
    %662 = vmatpush2.bf16.msra.mxu0 %v487
    %663 = vmatprep.mubr.bf16.mxu0 %v194
    %664 = vmatmul.mubr.bf16.gmra.mxu0 %v193
    %v665 = vpop.f32.mrf.mxu0
    %v666 = vadd.f32 %v626, %v665
    %v667 = vpop.f32.mrf.mxu0
    %v668 = vpop.f32.mrf.mxu0
    %v669 = vpop.f32.mrf.mxu0
    %670 = vdwg.mxu0
    %671 = vmatprep.subr.bf16.mxu0 0
    %672 = vmatpush1.bf16.msra.mxu0 %v502
    %673 = vmatprep.subr.bf16.mxu0 0
    %674 = vmatpush1.bf16.msra.mxu0 %v501
    %675 = vmatprep.subr.bf16.mxu0 0
    %676 = vmatpush1.bf16.msra.mxu0 %v500
    %677 = vmatprep.subr.bf16.mxu0 0
    %678 = vmatpush1.bf16.msra.mxu0 %v499
    %679 = vmatprep.subr.bf16.mxu0 0
    %680 = vmatpush1.bf16.msra.mxu0 %v498
    %681 = vmatprep.subr.bf16.mxu0 0
    %682 = vmatpush1.bf16.msra.mxu0 %v497
    %683 = vmatprep.subr.bf16.mxu0 0
    %684 = vmatpush1.bf16.msra.mxu0 %v496
    %685 = vmatprep.subr.bf16.mxu0 0
    %686 = vmatpush1.bf16.msra.mxu0 %v495
    %687 = vmatprep.subr.bf16.mxu0 0
    %688 = vmatpush2.bf16.msra.mxu0 %v510
    %689 = vmatprep.subr.bf16.mxu0 0
    %690 = vmatpush2.bf16.msra.mxu0 %v509
    %691 = vmatprep.subr.bf16.mxu0 0
    %692 = vmatpush2.bf16.msra.mxu0 %v508
    %693 = vmatprep.subr.bf16.mxu0 0
    %694 = vmatpush2.bf16.msra.mxu0 %v507
    %695 = vmatprep.subr.bf16.mxu0 0
    %696 = vmatpush2.bf16.msra.mxu0 %v506
    %697 = vmatprep.subr.bf16.mxu0 0
    %698 = vmatpush2.bf16.msra.mxu0 %v505
    %699 = vmatprep.subr.bf16.mxu0 0
    %700 = vmatpush2.bf16.msra.mxu0 %v504
    %701 = vmatprep.subr.bf16.mxu0 0
    %702 = vmatpush2.bf16.msra.mxu0 %v503
    %703 = vmatprep.mubr.bf16.mxu0 %v196
    %704 = vmatmul.mubr.bf16.gmra.mxu0 %v195
    %v705 = vpop.f32.mrf.mxu0
    %v706 = vadd.f32 %v666, %v705
    %v707 = vpop.f32.mrf.mxu0
    %v708 = vpop.f32.mrf.mxu0
    %v709 = vpop.f32.mrf.mxu0
    %710 = vdwg.mxu0
    %711 = vmatprep.subr.bf16.mxu0 0
    %712 = vmatpush1.bf16.msra.mxu0 %v518
    %713 = vmatprep.subr.bf16.mxu0 0
    %714 = vmatpush1.bf16.msra.mxu0 %v517
    %715 = vmatprep.subr.bf16.mxu0 0
    %716 = vmatpush1.bf16.msra.mxu0 %v516
    %717 = vmatprep.subr.bf16.mxu0 0
    %718 = vmatpush1.bf16.msra.mxu0 %v515
    %719 = vmatprep.subr.bf16.mxu0 0
    %720 = vmatpush1.bf16.msra.mxu0 %v514
    %721 = vmatprep.subr.bf16.mxu0 0
    %722 = vmatpush1.bf16.msra.mxu0 %v513
    %723 = vmatprep.subr.bf16.mxu0 0
    %724 = vmatpush1.bf16.msra.mxu0 %v512
    %725 = vmatprep.subr.bf16.mxu0 0
    %726 = vmatpush1.bf16.msra.mxu0 %v511
    %727 = vmatprep.subr.bf16.mxu0 0
    %728 = vmatpush2.bf16.msra.mxu0 %v526
    %729 = vmatprep.subr.bf16.mxu0 0
    %730 = vmatpush2.bf16.msra.mxu0 %v525
    %731 = vmatprep.subr.bf16.mxu0 0
    %732 = vmatpush2.bf16.msra.mxu0 %v524
    %733 = vmatprep.subr.bf16.mxu0 0
    %734 = vmatpush2.bf16.msra.mxu0 %v523
    %735 = vmatprep.subr.bf16.mxu0 0
    %736 = vmatpush2.bf16.msra.mxu0 %v522
    %737 = vmatprep.subr.bf16.mxu0 0
    %738 = vmatpush2.bf16.msra.mxu0 %v521
    %739 = vmatprep.subr.bf16.mxu0 0
    %740 = vmatpush2.bf16.msra.mxu0 %v520
    %741 = vmatprep.subr.bf16.mxu0 0
    %742 = vmatpush2.bf16.msra.mxu0 %v519
    %743 = vmatprep.mubr.bf16.mxu0 %v198
    %744 = vmatmul.mubr.bf16.gmra.mxu0 %v197
    %v745 = vpop.f32.mrf.mxu0
    %v746 = vadd.f32 %v706, %v745
    %v747 = vpop.f32.mrf.mxu0
    %v748 = vpop.f32.mrf.mxu0
    %v749 = vpop.f32.mrf.mxu0
    %750 = vdwg.mxu0
    %v751 = vmax.f32 %v746, 0.0
    %v752 = vpack.c.bf16 %v751, %v751
    %v753 = vld [vmem:[%s4] sm:$0xf]
    %v754 = vld [vmem:[%s4 + $0x4] sm:$0xf]
    %v755 = vld [vmem:[%s4 + $0x8] sm:$0xf]
    %v756 = vld [vmem:[%s4 + $0xc] sm:$0xf]
    %v757 = vld [vmem:[%s5] sm:$0x1]
    %v759 = vlaneseq
    %v760 = vshrl.u32 %v759, 7
    %v761 = vsub.s32 0, %v760
    %v762 = vrot.slane %v757, %v761
    %v768 = vunpack.c.l.b16 %v753
    %v769 = vunpack.c.l.b16 %v754
    %v770 = vunpack.c.l.b16 %v755
    %v771 = vunpack.c.l.b16 %v756
    %v772 = vpack.c.b16 %v769, %v768
    %v773 = vpack.c.b16 %v771, %v770
    %vm776 = vcmask 261120
    %v778 = vsel %vm776, %v752, 0
    %780 = vmatprep.subr.bf16.mxu0 0
    %781 = vmatpush1.bf16.msra.mxu0 0
    %782 = vmatprep.subr.bf16.mxu0 0
    %783 = vmatpush1.bf16.msra.mxu0 0
    %784 = vmatprep.subr.bf16.mxu0 0
    %785 = vmatpush1.bf16.msra.mxu0 0
    %786 = vmatprep.subr.bf16.mxu0 0
    %787 = vmatpush1.bf16.msra.mxu0 0
    %788 = vmatprep.subr.bf16.mxu0 0
    %789 = vmatpush1.bf16.msra.mxu0 0
    %790 = vmatprep.subr.bf16.mxu0 0
    %791 = vmatpush1.bf16.msra.mxu0 0
    %792 = vmatprep.subr.bf16.mxu0 0
    %793 = vmatpush1.bf16.msra.mxu0 %v773
    %794 = vmatprep.subr.bf16.mxu0 0
    %795 = vmatpush1.bf16.msra.mxu0 %v772
    %796 = vmatprep.subr.bf16.mxu0 0
    %797 = vmatpush2.bf16.msra.mxu0 0
    %798 = vmatprep.subr.bf16.mxu0 0
    %799 = vmatpush2.bf16.msra.mxu0 0
    %800 = vmatprep.subr.bf16.mxu0 0
    %801 = vmatpush2.bf16.msra.mxu0 0
    %802 = vmatprep.subr.bf16.mxu0 0
    %803 = vmatpush2.bf16.msra.mxu0 0
    %804 = vmatprep.subr.bf16.mxu0 0
    %805 = vmatpush2.bf16.msra.mxu0 0
    %806 = vmatprep.subr.bf16.mxu0 0
    %807 = vmatpush2.bf16.msra.mxu0 0
    %808 = vmatprep.subr.bf16.mxu0 0
    %809 = vmatpush2.bf16.msra.mxu0 0
    %810 = vmatprep.subr.bf16.mxu0 0
    %811 = vmatpush2.bf16.msra.mxu0 0
    %812 = vmatprep.mubr.bf16.mxu0 0
    %813 = vmatmul.mubr.bf16.gmra.mxu0 %v778
    %v814 = vpop.f32.mrf.mxu0
    %v815 = vadd.f32 %v762, %v814
    %v816 = vpop.f32.mrf.mxu0
    %v817 = vpop.f32.mrf.mxu0
    %v818 = vpop.f32.mrf.mxu0
    %819 = vdwg.mxu0
    %v820 = vld [vmem:[%s1] sm:$0xff]
    %v821 = vmul.f32 %v815, 0.5
    %v822 = vmul.f32 %v821, 1.442695
    %v823 = vpow.pop %v822
    %825 = vrot.lane.b32.xlu0 %v823, 120
    %v826 = vpop.permute.xlu0 %825
    %v828 = vmul.f32 %v820, %v826
    %v829 = vadd.f32 %v815, %v828
    %v830 = vpack.c.bf16 %v829, %v829
    %v831 = vld [vmem:[%s6] sm:$0xf]
    %v832 = vld [vmem:[%s7] sm:$0x1]
    %v834 = vlaneseq
    %v835 = vshrl.u32 %v834, 7
    %v836 = vsub.s32 0, %v835
    %v837 = vrot.slane %v832, %v836
    %vm839 = vcmask 64512
    %v841 = vsel %vm839, %v830, 0
    %vm843 = vcmask 1043456
    %v845 = vsel %vm843, %v831, 0
    %847 = vmatprep.subr.bf16.mxu0 0
    %848 = vmatpush1.bf16.msra.mxu0 0
    %849 = vmatprep.subr.bf16.mxu0 0
    %850 = vmatpush1.bf16.msra.mxu0 0
    %851 = vmatprep.subr.bf16.mxu0 0
    %852 = vmatpush1.bf16.msra.mxu0 0
    %853 = vmatprep.subr.bf16.mxu0 0
    %854 = vmatpush1.bf16.msra.mxu0 0
    %855 = vmatprep.subr.bf16.mxu0 0
    %856 = vmatpush1.bf16.msra.mxu0 0
    %857 = vmatprep.subr.bf16.mxu0 0
    %858 = vmatpush1.bf16.msra.mxu0 0
    %859 = vmatprep.subr.bf16.mxu0 0
    %860 = vmatpush1.bf16.msra.mxu0 0
    %861 = vmatprep.subr.bf16.mxu0 0
    %862 = vmatpush1.bf16.msra.mxu0 %v845
    %863 = vmatprep.subr.bf16.mxu0 0
    %864 = vmatpush2.bf16.msra.mxu0 0
    %865 = vmatprep.subr.bf16.mxu0 0
    %866 = vmatpush2.bf16.msra.mxu0 0
    %867 = vmatprep.subr.bf16.mxu0 0
    %868 = vmatpush2.bf16.msra.mxu0 0
    %869 = vmatprep.subr.bf16.mxu0 0
    %870 = vmatpush2.bf16.msra.mxu0 0
    %871 = vmatprep.subr.bf16.mxu0 0
    %872 = vmatpush2.bf16.msra.mxu0 0
    %873 = vmatprep.subr.bf16.mxu0 0
    %874 = vmatpush2.bf16.msra.mxu0 0
    %875 = vmatprep.subr.bf16.mxu0 0
    %876 = vmatpush2.bf16.msra.mxu0 0
    %877 = vmatprep.subr.bf16.mxu0 0
    %878 = vmatpush2.bf16.msra.mxu0 0
    %879 = vmatprep.mubr.bf16.mxu0 0
    %880 = vmatmul.mubr.bf16.gmra.mxu0 %v841
    %v881 = vpop.f32.mrf.mxu0
    %v882 = vadd.f32 %v837, %v881
    %v883 = vpop.f32.mrf.mxu0
    %v884 = vpop.f32.mrf.mxu0
    %v885 = vpop.f32.mrf.mxu0
    %886 = vdwg.mxu0
    %v887 = vmax.f32 %v882, 0.0
    %v888 = vpack.c.bf16 %v887, %v887
    %v889 = vld [vmem:[%s8] sm:$0xff]
    %v890 = vld [vmem:[%s8 + $0x8] sm:$0xff]
    %v891 = vld [vmem:[%s8 + $0x10] sm:$0xff]
    %v892 = vld [vmem:[%s8 + $0x18] sm:$0xff]
    %v893 = vld [vmem:[%s8 + $0x20] sm:$0xff]
    %v894 = vld [vmem:[%s8 + $0x28] sm:$0xff]
    %v895 = vld [vmem:[%s8 + $0x30] sm:$0xff]
    %v896 = vld [vmem:[%s8 + $0x38] sm:$0xff]
    %v897 = vld [vmem:[%s8 + $0x40] sm:$0xff]
    %v898 = vld [vmem:[%s8 + $0x48] sm:$0xff]
    %v899 = vld [vmem:[%s8 + $0x50] sm:$0xff]
    %v900 = vld [vmem:[%s8 + $0x58] sm:$0xff]
    %v901 = vld [vmem:[%s8 + $0x60] sm:$0xff]
    %v902 = vld [vmem:[%s8 + $0x68] sm:$0xff]
    %v903 = vld [vmem:[%s8 + $0x70] sm:$0xff]
    %v904 = vld [vmem:[%s8 + $0x78] sm:$0xff]
    %v905 = vld [vmem:[%s9] sm:$0xff]
    %v907 = vlaneseq
    %v908 = vshrl.u32 %v907, 7
    %v909 = vsub.s32 0, %v908
    %v910 = vrot.slane %v905, %v909
    %v911 = vlaneseq
    %v912 = vshrl.u32 %v911, 7
    %v913 = vsub.s32 1, %v912
    %v914 = vrot.slane %v905, %v913
    %v915 = vlaneseq
    %v916 = vshrl.u32 %v915, 7
    %v917 = vsub.s32 2, %v916
    %v918 = vrot.slane %v905, %v917
    %v919 = vlaneseq
    %v920 = vshrl.u32 %v919, 7
    %v921 = vsub.s32 3, %v920
    %v922 = vrot.slane %v905, %v921
    %v923 = vlaneseq
    %v924 = vshrl.u32 %v923, 7
    %v925 = vsub.s32 4, %v924
    %v926 = vrot.slane %v905, %v925
    %v927 = vlaneseq
    %v928 = vshrl.u32 %v927, 7
    %v929 = vsub.s32 5, %v928
    %v930 = vrot.slane %v905, %v929
    %v931 = vlaneseq
    %v932 = vshrl.u32 %v931, 7
    %v933 = vsub.s32 6, %v932
    %v934 = vrot.slane %v905, %v933
    %v935 = vlaneseq
    %v936 = vshrl.u32 %v935, 7
    %v937 = vsub.s32 7, %v936
    %v938 = vrot.slane %v905, %v937
    %v963 = vunpack.c.l.b16 %v889
    %v964 = vunpack.c.h.b16 %v889
    %v965 = vunpack.c.l.b16 %v890
    %v966 = vunpack.c.h.b16 %v890
    %v967 = vunpack.c.l.b16 %v891
    %v968 = vunpack.c.h.b16 %v891
    %v969 = vunpack.c.l.b16 %v892
    %v970 = vunpack.c.h.b16 %v892
    %v971 = vunpack.c.l.b16 %v893
    %v972 = vunpack.c.h.b16 %v893
    %v973 = vunpack.c.l.b16 %v894
    %v974 = vunpack.c.h.b16 %v894
    %v975 = vunpack.c.l.b16 %v895
    %v976 = vunpack.c.h.b16 %v895
    %v977 = vunpack.c.l.b16 %v896
    %v978 = vunpack.c.h.b16 %v896
    %v979 = vunpack.c.l.b16 %v897
    %v980 = vunpack.c.h.b16 %v897
    %v981 = vunpack.c.l.b16 %v898
    %v982 = vunpack.c.h.b16 %v898
    %v983 = vunpack.c.l.b16 %v899
    %v984 = vunpack.c.h.b16 %v899
    %v985 = vunpack.c.l.b16 %v900
    %v986 = vunpack.c.h.b16 %v900
    %v987 = vunpack.c.l.b16 %v901
    %v988 = vunpack.c.h.b16 %v901
    %v989 = vunpack.c.l.b16 %v902
    %v990 = vunpack.c.h.b16 %v902
    %v991 = vunpack.c.l.b16 %v903
    %v992 = vunpack.c.h.b16 %v903
    %v993 = vunpack.c.l.b16 %v904
    %v994 = vunpack.c.h.b16 %v904
    %v995 = vpack.c.b16 %v971, %v963
    %v996 = vpack.c.b16 %v972, %v964
    %v997 = vpack.c.b16 %v973, %v965
    %v998 = vpack.c.b16 %v974, %v966
    %v999 = vpack.c.b16 %v975, %v967
    %v1000 = vpack.c.b16 %v976, %v968
    %v1001 = vpack.c.b16 %v977, %v969
    %v1002 = vpack.c.b16 %v978, %v970
    %v1003 = vpack.c.b16 %v987, %v979
    %v1004 = vpack.c.b16 %v988, %v980
    %v1005 = vpack.c.b16 %v989, %v981
    %v1006 = vpack.c.b16 %v990, %v982
    %v1007 = vpack.c.b16 %v991, %v983
    %v1008 = vpack.c.b16 %v992, %v984
    %v1009 = vpack.c.b16 %v993, %v985
    %v1010 = vpack.c.b16 %v994, %v986
    %v1028 = vsel %vm776, %v888, 0
    %1030 = vmatprep.subr.bf16.mxu0 0
    %1031 = vmatpush1.bf16.msra.mxu0 0
    %1032 = vmatprep.subr.bf16.mxu0 0
    %1033 = vmatpush1.bf16.msra.mxu0 0
    %1034 = vmatprep.subr.bf16.mxu0 0
    %1035 = vmatpush1.bf16.msra.mxu0 0
    %1036 = vmatprep.subr.bf16.mxu0 0
    %1037 = vmatpush1.bf16.msra.mxu0 0
    %1038 = vmatprep.subr.bf16.mxu0 0
    %1039 = vmatpush1.bf16.msra.mxu0 0
    %1040 = vmatprep.subr.bf16.mxu0 0
    %1041 = vmatpush1.bf16.msra.mxu0 0
    %1042 = vmatprep.subr.bf16.mxu0 %v1004
    %1043 = vmatpush1.bf16.msra.mxu0 %v1003
    %1044 = vmatprep.subr.bf16.mxu0 %v996
    %1045 = vmatpush1.bf16.msra.mxu0 %v995
    %1046 = vmatprep.subr.bf16.mxu0 0
    %1047 = vmatpush2.bf16.msra.mxu0 0
    %1048 = vmatprep.subr.bf16.mxu0 0
    %1049 = vmatpush2.bf16.msra.mxu0 0
    %1050 = vmatprep.subr.bf16.mxu0 0
    %1051 = vmatpush2.bf16.msra.mxu0 0
    %1052 = vmatprep.subr.bf16.mxu0 0
    %1053 = vmatpush2.bf16.msra.mxu0 0
    %1054 = vmatprep.subr.bf16.mxu0 0
    %1055 = vmatpush2.bf16.msra.mxu0 0
    %1056 = vmatprep.subr.bf16.mxu0 0
    %1057 = vmatpush2.bf16.msra.mxu0 0
    %1058 = vmatprep.subr.bf16.mxu0 0
    %1059 = vmatpush2.bf16.msra.mxu0 0
    %1060 = vmatprep.subr.bf16.mxu0 0
    %1061 = vmatpush2.bf16.msra.mxu0 0
    %1062 = vmatprep.mubr.bf16.mxu0 0
    %1063 = vmatmul.mubr.bf16.gmra.mxu0 %v1028
    %v1064 = vpop.f32.mrf.mxu0
    %v1065 = vadd.f32 %v910, %v1064
    %v1066 = vpop.f32.mrf.mxu0
    %v1067 = vadd.f32 %v914, %v1066
    %v1068 = vpop.f32.mrf.mxu0
    %v1069 = vpop.f32.mrf.mxu0
    %1070 = vdwg.mxu0
    %1071 = vmatprep.subr.bf16.mxu0 0
    %1072 = vmatpush1.bf16.msra.mxu0 0
    %1073 = vmatprep.subr.bf16.mxu0 0
    %1074 = vmatpush1.bf16.msra.mxu0 0
    %1075 = vmatprep.subr.bf16.mxu0 0
    %1076 = vmatpush1.bf16.msra.mxu0 0
    %1077 = vmatprep.subr.bf16.mxu0 0
    %1078 = vmatpush1.bf16.msra.mxu0 0
    %1079 = vmatprep.subr.bf16.mxu0 0
    %1080 = vmatpush1.bf16.msra.mxu0 0
    %1081 = vmatprep.subr.bf16.mxu0 0
    %1082 = vmatpush1.bf16.msra.mxu0 0
    %1083 = vmatprep.subr.bf16.mxu0 %v1006
    %1084 = vmatpush1.bf16.msra.mxu0 %v1005
    %1085 = vmatprep.subr.bf16.mxu0 %v998
    %1086 = vmatpush1.bf16.msra.mxu0 %v997
    %1087 = vmatprep.subr.bf16.mxu0 0
    %1088 = vmatpush2.bf16.msra.mxu0 0
    %1089 = vmatprep.subr.bf16.mxu0 0
    %1090 = vmatpush2.bf16.msra.mxu0 0
    %1091 = vmatprep.subr.bf16.mxu0 0
    %1092 = vmatpush2.bf16.msra.mxu0 0
    %1093 = vmatprep.subr.bf16.mxu0 0
    %1094 = vmatpush2.bf16.msra.mxu0 0
    %1095 = vmatprep.subr.bf16.mxu0 0
    %1096 = vmatpush2.bf16.msra.mxu0 0
    %1097 = vmatprep.subr.bf16.mxu0 0
    %1098 = vmatpush2.bf16.msra.mxu0 0
    %1099 = vmatprep.subr.bf16.mxu0 0
    %1100 = vmatpush2.bf16.msra.mxu0 0
    %1101 = vmatprep.subr.bf16.mxu0 0
    %1102 = vmatpush2.bf16.msra.mxu0 0
    %1103 = vmatprep.mubr.bf16.mxu0 0
    %1104 = vmatmul.mubr.bf16.gmra.mxu0 %v1028
    %v1105 = vpop.f32.mrf.mxu0
    %v1106 = vadd.f32 %v918, %v1105
    %v1107 = vpop.f32.mrf.mxu0
    %v1108 = vadd.f32 %v922, %v1107
    %v1109 = vpop.f32.mrf.mxu0
    %v1110 = vpop.f32.mrf.mxu0
    %1111 = vdwg.mxu0
    %1112 = vmatprep.subr.bf16.mxu0 0
    %1113 = vmatpush1.bf16.msra.mxu0 0
    %1114 = vmatprep.subr.bf16.mxu0 0
    %1115 = vmatpush1.bf16.msra.mxu0 0
    %1116 = vmatprep.subr.bf16.mxu0 0
    %1117 = vmatpush1.bf16.msra.mxu0 0
    %1118 = vmatprep.subr.bf16.mxu0 0
    %1119 = vmatpush1.bf16.msra.mxu0 0
    %1120 = vmatprep.subr.bf16.mxu0 0
    %1121 = vmatpush1.bf16.msra.mxu0 0
    %1122 = vmatprep.subr.bf16.mxu0 0
    %1123 = vmatpush1.bf16.msra.mxu0 0
    %1124 = vmatprep.subr.bf16.mxu0 %v1008
    %1125 = vmatpush1.bf16.msra.mxu0 %v1007
    %1126 = vmatprep.subr.bf16.mxu0 %v1000
    %1127 = vmatpush1.bf16.msra.mxu0 %v999
    %1128 = vmatprep.subr.bf16.mxu0 0
    %1129 = vmatpush2.bf16.msra.mxu0 0
    %1130 = vmatprep.subr.bf16.mxu0 0
    %1131 = vmatpush2.bf16.msra.mxu0 0
    %1132 = vmatprep.subr.bf16.mxu0 0
    %1133 = vmatpush2.bf16.msra.mxu0 0
    %1134 = vmatprep.subr.bf16.mxu0 0
    %1135 = vmatpush2.bf16.msra.mxu0 0
    %1136 = vmatprep.subr.bf16.mxu0 0
    %1137 = vmatpush2.bf16.msra.mxu0 0
    %1138 = vmatprep.subr.bf16.mxu0 0
    %1139 = vmatpush2.bf16.msra.mxu0 0
    %1140 = vmatprep.subr.bf16.mxu0 0
    %1141 = vmatpush2.bf16.msra.mxu0 0
    %1142 = vmatprep.subr.bf16.mxu0 0
    %1143 = vmatpush2.bf16.msra.mxu0 0
    %1144 = vmatprep.mubr.bf16.mxu0 0
    %1145 = vmatmul.mubr.bf16.gmra.mxu0 %v1028
    %v1146 = vpop.f32.mrf.mxu0
    %v1147 = vadd.f32 %v926, %v1146
    %v1148 = vpop.f32.mrf.mxu0
    %v1149 = vadd.f32 %v930, %v1148
    %v1150 = vpop.f32.mrf.mxu0
    %v1151 = vpop.f32.mrf.mxu0
    %1152 = vdwg.mxu0
    %1153 = vmatprep.subr.bf16.mxu0 0
    %1154 = vmatpush1.bf16.msra.mxu0 0
    %1155 = vmatprep.subr.bf16.mxu0 0
    %1156 = vmatpush1.bf16.msra.mxu0 0
    %1157 = vmatprep.subr.bf16.mxu0 0
    %1158 = vmatpush1.bf16.msra.mxu0 0
    %1159 = vmatprep.subr.bf16.mxu0 0
    %1160 = vmatpush1.bf16.msra.mxu0 0
    %1161 = vmatprep.subr.bf16.mxu0 0
    %1162 = vmatpush1.bf16.msra.mxu0 0
    %1163 = vmatprep.subr.bf16.mxu0 0
    %1164 = vmatpush1.bf16.msra.mxu0 0
    %1165 = vmatprep.subr.bf16.mxu0 %v1010
    %1166 = vmatpush1.bf16.msra.mxu0 %v1009
    %1167 = vmatprep.subr.bf16.mxu0 %v1002
    %1168 = vmatpush1.bf16.msra.mxu0 %v1001
    %1169 = vmatprep.subr.bf16.mxu0 0
    %1170 = vmatpush2.bf16.msra.mxu0 0
    %1171 = vmatprep.subr.bf16.mxu0 0
    %1172 = vmatpush2.bf16.msra.mxu0 0
    %1173 = vmatprep.subr.bf16.mxu0 0
    %1174 = vmatpush2.bf16.msra.mxu0 0
    %1175 = vmatprep.subr.bf16.mxu0 0
    %1176 = vmatpush2.bf16.msra.mxu0 0
    %1177 = vmatprep.subr.bf16.mxu0 0
    %1178 = vmatpush2.bf16.msra.mxu0 0
    %1179 = vmatprep.subr.bf16.mxu0 0
    %1180 = vmatpush2.bf16.msra.mxu0 0
    %1181 = vmatprep.subr.bf16.mxu0 0
    %1182 = vmatpush2.bf16.msra.mxu0 0
    %1183 = vmatprep.subr.bf16.mxu0 0
    %1184 = vmatpush2.bf16.msra.mxu0 0
    %1185 = vmatprep.mubr.bf16.mxu0 0
    %1186 = vmatmul.mubr.bf16.gmra.mxu0 %v1028
    %v1187 = vpop.f32.mrf.mxu0
    %v1188 = vadd.f32 %v934, %v1187
    %v1189 = vpop.f32.mrf.mxu0
    %v1190 = vadd.f32 %v938, %v1189
    %v1191 = vpop.f32.mrf.mxu0
    %v1192 = vpop.f32.mrf.mxu0
    %1193 = vdwg.mxu0
    %v1194 = vxor.u32 %v1065, 2147483648
    %v1195 = vxor.u32 %v1067, 2147483648
    %v1196 = vxor.u32 %v1106, 2147483648
    %v1197 = vxor.u32 %v1108, 2147483648
    %v1198 = vxor.u32 %v1147, 2147483648
    %v1199 = vxor.u32 %v1149, 2147483648
    %v1200 = vxor.u32 %v1188, 2147483648
    %v1201 = vxor.u32 %v1190, 2147483648
    %v1202 = vmul.f32 %v1194, 1.442695
    %v1203 = vpow.pop %v1202
    %v1204 = vmul.f32 %v1195, 1.442695
    %v1205 = vpow.pop %v1204
    %v1206 = vmul.f32 %v1196, 1.442695
    %v1207 = vpow.pop %v1206
    %v1208 = vmul.f32 %v1197, 1.442695
    %v1209 = vpow.pop %v1208
    %v1210 = vmul.f32 %v1198, 1.442695
    %v1211 = vpow.pop %v1210
    %v1212 = vmul.f32 %v1199, 1.442695
    %v1213 = vpow.pop %v1212
    %v1214 = vmul.f32 %v1200, 1.442695
    %v1215 = vpow.pop %v1214
    %v1216 = vmul.f32 %v1201, 1.442695
    %v1217 = vpow.pop %v1216
    %v1218 = vadd.f32 %v1203, 1.0
    %v1219 = vadd.f32 %v1205, 1.0
    %v1220 = vadd.f32 %v1207, 1.0
    %v1221 = vadd.f32 %v1209, 1.0
    %v1222 = vadd.f32 %v1211, 1.0
    %v1223 = vadd.f32 %v1213, 1.0
    %v1224 = vadd.f32 %v1215, 1.0
    %v1225 = vadd.f32 %v1217, 1.0
    %v1226 = vrcp.pop %v1218
    %v1227 = vmul.f32 1.0, %v1226
    %v1228 = vrcp.pop %v1219
    %v1229 = vmul.f32 1.0, %v1228
    %v1230 = vrcp.pop %v1220
    %v1231 = vmul.f32 1.0, %v1230
    %v1232 = vrcp.pop %v1221
    %v1233 = vmul.f32 1.0, %v1232
    %v1234 = vrcp.pop %v1222
    %v1235 = vmul.f32 1.0, %v1234
    %v1236 = vrcp.pop %v1223
    %v1237 = vmul.f32 1.0, %v1236
    %v1238 = vrcp.pop %v1224
    %v1239 = vmul.f32 1.0, %v1238
    %v1240 = vrcp.pop %v1225
    %v1241 = vmul.f32 1.0, %v1240
    %1242 = vst [vmem:[#allocation2] sm:$0xff] %v1227
    %1243 = vst [vmem:[#allocation2 + $0x8] sm:$0xff] %v1229
    %1244 = vst [vmem:[#allocation2 + $0x10] sm:$0xff] %v1231
    %1245 = vst [vmem:[#allocation2 + $0x18] sm:$0xff] %v1233
    %1246 = vst [vmem:[#allocation2 + $0x20] sm:$0xff] %v1235
    %1247 = vst [vmem:[#allocation2 + $0x28] sm:$0xff] %v1237
    %1248 = vst [vmem:[#allocation2 + $0x30] sm:$0xff] %v1239
    %1249 = vst [vmem:[#allocation2 + $0x38] sm:$0xff] %v1241
    %vm1250 = vcmask 130048
    %1251 = vst.msk [vmem:[#allocation4] sm:$0xff] %vm1250, %v815
    // Predicated region
    $region42: #{tpu_custom_call.1} parent=1 // pred_check
      _
    $region43: #{tpu_custom_call.1} parent=1 // pred_check_branch
      %1253 = sbr.rel (0) target = $region45
    $region44: #{tpu_custom_call.1} parent=1 // pred_region
      %s1255 = ssub.s32 1024, 1024
      %1256 = vsyncadd [#allocation3], %s1255
      %s1258 = sshll.u32 [#allocation2], 4
      %s1259 = int_to_ptr.vmem [resolvable:$true] %s1258
      %1261 = dma.vmem_to_hbm [thread:$0]  %s1259, 1024, %s10, [#allocation3]
    $region45: #{tpu_custom_call.1} parent=1 // pred_fallthru
      _
    // Predicated region
    $region46: #{tpu_custom_call.1} parent=1 // pred_check
      _
    $region47: #{tpu_custom_call.1} parent=1 // pred_check_branch
      %1263 = sbr.rel (0) target = $region49
    $region48: #{tpu_custom_call.1} parent=1 // pred_region
      %s1265 = ssub.s32 128, 128
      %1266 = vsyncadd [#allocation5], %s1265
      %s1268 = sshll.u32 [#allocation4], 4
      %s1269 = int_to_ptr.vmem [resolvable:$true] %s1268
      %1271 = dma.vmem_to_hbm [thread:$0]  %s1269, 128, %s11, [#allocation5]
    $region49: #{tpu_custom_call.1} parent=1 // pred_fallthru
      _
    // Predicated region
    $region50: #{tpu_custom_call.1} parent=1 // pred_check
      _
    $region51: #{tpu_custom_call.1} parent=1 // pred_check_branch
      %1273 = sbr.rel (0) target = $region53
    $region52: #{tpu_custom_call.1} parent=1 // pred_region
      %1274 = dma.done [#allocation3], 1024
    $region53: #{tpu_custom_call.1} parent=1 // pred_fallthru
      _
    // Predicated region
    $region54: #{tpu_custom_call.1} parent=1 // pred_check
      _
    $region55: #{tpu_custom_call.1} parent=1 // pred_check_branch
      %1276 = sbr.rel (0) target = $region57
    $region56: #{tpu_custom_call.1} parent=1 // pred_region
      %1277 = dma.done [#allocation5], 128
    $region57: #{tpu_custom_call.1} parent=1 // pred_fallthru
      _
    %1278 = vsyncpa [#allocation3], 1
    %1279 = vsyncpa [#allocation5], 1

</llo_original>
